<compile_context>
chip_gen: v7x
topology: tpu7x:2x2x1
jax: 0.10.0
libtpu: 0.0.40
codegen_flags: <defaults>
</compile_context>

<pallas_src>
import functools

import jax
import jax.numpy as jnp
from jax.experimental import pallas as pl
from jax.experimental.pallas import tpu as pltpu


def _round_up(x, m):
    return ((x + m - 1) // m) * m


# ----------------------------------------------------------------------------
# Pallas kernel: a tile of Bt batch elements per grid step.
#   xcol_ref : (Bt, L, KC)    bf16   im2col slab (K folded into last dim)
#   w1x_ref  : (KC, 2*Cp)     bf16   [conv1*bn1_scale | conv_x] stacked weights
#   w2_ref   : (K, Cp, Cp)    bf16   conv2 weights * bn2_scale, per tap
#   off1_ref : (1, Cp)        f32    b1*s1 + bn1_offset
#   off2_ref : (1, Cp)        f32    b2*s2 + bn2_offset + bx
#   out_ref  : (Bt, L//2, Cp) f32
#   h1pad    : (Bt, L+K-1, Cp) f32   scratch for conv2 'same' padding
# ----------------------------------------------------------------------------
def _resblock_kernel(xcol_ref, w1x_ref, w2_ref, off1_ref, off2_ref,
                     out_ref, h1pad):
    Bt, Lh, Cp = out_ref.shape
    L = xcol_ref.shape[1]
    KC = xcol_ref.shape[2]
    K = w2_ref.shape[0]
    pad_l = (K - 1) // 2
    pad_r = (K - 1) - pad_l

    # --- conv1(x) and conv_x(x): one fused deep bf16 matmul (MXU) ------------
    xcol = xcol_ref[...].reshape(Bt * L, KC)                  # bf16
    acc = jnp.dot(xcol, w1x_ref[...], preferred_element_type=jnp.float32)
    h1 = jnp.maximum(acc[:, :Cp] + off1_ref[...], 0.0)        # bn1(+b1) + relu
    accx = acc[:, Cp:]                                        # conv_x (bias folded)

    # --- conv2(h1): spatially padded scratch, K accumulating matmuls ---------
    # Only the K-1 pad rows get zeroed (interior is fully overwritten); done
    # every step so the kernel stays correct under megacore grid sharding.
    if pad_l:
        h1pad[:, :pad_l, :] = jnp.zeros((Bt, pad_l, Cp), h1pad.dtype)
    if pad_r:
        h1pad[:, pad_l + L:, :] = jnp.zeros((Bt, pad_r, Cp), h1pad.dtype)
    h1pad[:, pad_l:pad_l + L, :] = h1.reshape(Bt, L, Cp)

    acc2 = jnp.zeros((Bt * L, Cp), jnp.float32)
    for t in range(K):                        # K is small & static -> unrolled
        tap = h1pad[:, t:t + L, :].reshape(Bt * L, Cp).astype(jnp.bfloat16)
        acc2 = acc2 + jnp.dot(tap, w2_ref[t],
                              preferred_element_type=jnp.float32)

    # --- bn2 (+ identity dropout) + residual + relu ---------------------------
    r = jnp.maximum(acc2 + accx + off2_ref[...], 0.0)         # (Bt*L, Cp)
    r3 = r.reshape(Bt, L, Cp)

    # --- maxpool1d(kernel=2, stride=2) along L, lane-dense stores -------------
    for b in range(Bt):                       # Bt small & static -> unrolled
        out_ref[b] = jnp.max(r3[b].reshape(Lh, 2, Cp), axis=1).astype(out_ref.dtype)


@functools.partial(jax.jit, static_argnames=("kernel_size",))
def residual_block_pallas(x_ncl, params, kernel_size):
    """x_ncl: (N, Cin, L) float32, PyTorch Conv1d layout. Returns (N, Cout, L//2)."""
    w1, b1, w2, b2, wx, bx, bn1, bn2 = params
    N, Cin, L = x_ncl.shape
    K = kernel_size
    Cout = w1.shape[0]
    assert L % 2 == 0, "MaxPool1d(2,2) path assumes even length"
    pad_l = (K - 1) // 2
    pad_r = (K - 1) - pad_l
    eps = 1e-5

    Cp = _round_up(Cout, 128)        # lane-dense channel padding
    KC = _round_up(K * Cin, 128)     # im2col contraction depth padding
    Lh = L // 2
    Lp = L + K - 1

    # Batch tile per grid step (amortize per-step pipeline overhead). For very
    # large L / channel counts this should be re-sized against VMEM (64 MiB on
    # v7x); at these shapes the footprint is tiny.
    Bt = max(1, min(N, 8))
    Np = _round_up(N, Bt)

    # ---- glue: layout, im2col, BN/bias folding (plain JAX) -------------------
    def bn_affine(bn):
        gamma, beta, mean, var = bn
        s = gamma / jnp.sqrt(var + eps)
        o = beta - mean * s
        return s, o

    s1, o1 = bn_affine(bn1)
    s2, o2 = bn_affine(bn2)
    off1 = o1 + b1 * s1                       # bn1 offset with conv1 bias folded
    off2 = o2 + b2 * s2 + bx                  # bn2 offset + conv2 bias + conv_x bias
    off1 = jnp.pad(off1, (0, Cp - Cout)).reshape(1, Cp).astype(jnp.float32)
    off2 = jnp.pad(off2, (0, Cp - Cout)).reshape(1, Cp).astype(jnp.float32)

    def to_kc(w):                             # (Cout, Cin_, K) -> (K*Cin_, Cout)
        return jnp.transpose(w, (2, 1, 0)).reshape(K * w.shape[1], Cout)

    def pad_cols(w):                          # (R, Cout) -> (R, Cp)
        return jnp.pad(w, ((0, 0), (0, Cp - Cout)))

    w1_kc = to_kc(w1) * s1[None, :]           # fold BN1 scale into conv1 weights
    wx_kc = to_kc(wx)
    w1x = jnp.concatenate([pad_cols(w1_kc), pad_cols(wx_kc)], axis=1)  # (K*Cin, 2Cp)
    w1x = jnp.pad(w1x, ((0, KC - K * Cin), (0, 0))).astype(jnp.bfloat16)

    w2_k = jnp.transpose(w2, (2, 1, 0)) * s2[None, None, :]            # (K, Cout, Cout)
    w2_k = jnp.pad(w2_k, ((0, 0), (0, Cp - Cout),
                          (0, Cp - Cout))).astype(jnp.bfloat16)        # (K, Cp, Cp)

    # im2col slab: x_col[n, l, t*Cin + c] = x_padded[n, l + t, c]
    x_nlc = jnp.transpose(x_ncl, (0, 2, 1)).astype(jnp.float32)        # (N, L, Cin)
    x_sp = jnp.pad(x_nlc, ((0, Np - N), (pad_l, pad_r), (0, 0)))       # (Np, Lp, Cin)
    x_col = jnp.concatenate([x_sp[:, t:t + L, :] for t in range(K)], axis=-1)
    x_col = jnp.pad(x_col, ((0, 0), (0, 0),
                            (0, KC - K * Cin))).astype(jnp.bfloat16)   # (Np, L, KC)

    out = pl.pallas_call(
        _resblock_kernel,
        out_shape=jax.ShapeDtypeStruct((Np, Lh, Cp), jnp.float32),
        grid=(Np // Bt,),
        in_specs=[
            pl.BlockSpec((Bt, L, KC), lambda n: (n, 0, 0)),   # im2col input
            pl.BlockSpec((KC, 2 * Cp), lambda n: (0, 0)),     # fused conv1|conv_x
            pl.BlockSpec((K, Cp, Cp), lambda n: (0, 0, 0)),   # conv2 weights
            pl.BlockSpec((1, Cp), lambda n: (0, 0)),          # folded offset 1
            pl.BlockSpec((1, Cp), lambda n: (0, 0)),          # folded offset 2
        ],
        out_specs=pl.BlockSpec((Bt, Lh, Cp), lambda n: (n, 0, 0)),
        scratch_shapes=[pltpu.VMEM((Bt, Lp, Cp), jnp.float32)],
        compiler_params=pltpu.CompilerParams(
            dimension_semantics=("parallel",)),
    )(x_col, w1x, w2_k, off1, off2)

    out = out[:N, :, :Cout]                   # drop batch / channel padding
    return jnp.transpose(out, (0, 2, 1))      # back to (N, Cout, L//2)


# ----------------------------------------------------------------------------
# Pure-JAX reference (mirrors the PyTorch eval-mode forward) for validation.
# ----------------------------------------------------------------------------
def residual_block_ref(x, params, kernel_size):
    w1, b1, w2, b2, wx, bx, bn1, bn2 = params
    K = kernel_size
    pad_l = (K - 1) // 2
    pad_r = (K - 1) - pad_l
    eps = 1e-5

    def conv(x, w, b):
        y = jax.lax.conv_general_dilated(
            x, w, window_strides=(1,), padding=[(pad_l, pad_r)],
            dimension_numbers=("NCH", "OIH", "NCH"))
        return y + b[None, :, None]

    def bn(x, p):
        gamma, beta, mean, var = p
        return ((x - mean[None, :, None]) / jnp.sqrt(var[None, :, None] + eps)
                * gamma[None, :, None] + beta[None, :, None])

    h = jax.nn.relu(bn(conv(x, w1, b1), bn1))
    y = bn(conv(h, w2, b2), bn2) + conv(x, wx, bx)
    y = jax.nn.relu(y)
    N, C, L = y.shape
    return jnp.max(y.reshape(N, C, L // 2, 2), axis=-1)


def init_params(key, in_channels, out_channels, kernel_size):
    """Deterministic init matching PyTorch Conv1d/BatchNorm1d parameter shapes."""
    ks = jax.random.split(key, 6)

    def conv_init(kw, kb, cin):
        bound = 1.0 / jnp.sqrt(cin * kernel_size)
        w = jax.random.uniform(kw, (out_channels, cin, kernel_size),
                               jnp.float32, -bound, bound)
        b = jax.random.uniform(kb, (out_channels,), jnp.float32, -bound, bound)
        return w, b

    w1, b1 = conv_init(ks[0], ks[1], in_channels)
    w2, b2 = conv_init(ks[2], ks[3], out_channels)
    wx, bx = conv_init(ks[4], ks[5], in_channels)
    bn_init = (jnp.ones((out_channels,), jnp.float32),   # gamma
               jnp.zeros((out_channels,), jnp.float32),  # beta
               jnp.zeros((out_channels,), jnp.float32),  # running_mean
               jnp.ones((out_channels,), jnp.float32))   # running_var
    return (w1, b1, w2, b2, wx, bx, bn_init, bn_init)


if __name__ == "__main__":
    N, Cin, Cout, L, K = 2, 4, 8, 16, 3

    key = jax.random.PRNGKey(0)
    kx, kp = jax.random.split(key)
    x = jax.random.normal(kx, (N, Cin, L), jnp.float32)   # PyTorch NCL input
    params = init_params(kp, Cin, Cout, K)

    out = residual_block_pallas(x, params, kernel_size=K)
    out = jax.block_until_ready(out)

    ref = residual_block_ref(x, params, kernel_size=K)
    assert out.shape == (N, Cout, L // 2), out.shape
    max_err = float(jnp.max(jnp.abs(out - ref)))
    # bf16 matmul inputs (f32 accumulation) -> slightly relaxed tolerance.
    assert jnp.allclose(out, ref, atol=3e-2, rtol=3e-2), max_err

    print("KERNEL_OK")
</pallas_src>

<mosaic_0001>
module attributes {stable_mosaic.version = 11 : i64} {
  func.func @_resblock_kernel(%arg0: i32, %arg1: memref<2x16x128xbf16, #tpu.memory_space<vmem>>, %arg2: memref<128x256xbf16, #tpu.memory_space<vmem>>, %arg3: memref<3x128x128xbf16, #tpu.memory_space<vmem>>, %arg4: memref<1x128xf32, #tpu.memory_space<vmem>>, %arg5: memref<1x128xf32, #tpu.memory_space<vmem>>, %arg6: memref<2x8x128xf32, #tpu.memory_space<vmem>>, %arg7: memref<2x18x128xf32, #tpu.memory_space<vmem>>) attributes {dimension_semantics = [#tpu.dimension_semantics<parallel>], iteration_bounds = array<i64: 1>, scalar_prefetch = 0 : i64, scratch_operands = 1 : i64, tpu.core_type = #tpu.core_type<tc>, window_params = [{transform_indices = @transform_0, window_bounds = array<i64: 2, 16, 128>}, {pipeline_mode = #tpu.pipeline_mode<synchronous>, transform_indices = @transform_1, window_bounds = array<i64: 128, 256>}, {pipeline_mode = #tpu.pipeline_mode<synchronous>, transform_indices = @transform_2, window_bounds = array<i64: 3, 128, 128>}, {pipeline_mode = #tpu.pipeline_mode<synchronous>, transform_indices = @transform_3, window_bounds = array<i64: 1, 128>}, {pipeline_mode = #tpu.pipeline_mode<synchronous>, transform_indices = @transform_4, window_bounds = array<i64: 1, 128>}, {transform_indices = @transform_5, window_bounds = array<i64: 2, 8, 128>}]} {
    %c0 = arith.constant 0 : index
    %c0_0 = arith.constant 0 : index
    %c0_1 = arith.constant 0 : index
    %0 = vector.load %arg1[%c0, %c0_0, %c0_1] : memref<2x16x128xbf16, #tpu.memory_space<vmem>>, vector<2x16x128xbf16>
    %1 = vector.shape_cast %0 : vector<2x16x128xbf16> to vector<32x128xbf16>
    %c0_2 = arith.constant 0 : index
    %c0_3 = arith.constant 0 : index
    %2 = vector.load %arg2[%c0_2, %c0_3] : memref<128x256xbf16, #tpu.memory_space<vmem>>, vector<128x256xbf16>
    %cst = arith.constant dense<0.000000e+00> : vector<32x256xf32>
    %3 = tpu.matmul %1, %2, %cst {dimension_numbers = #tpu.dot_dimension_numbers<[1], [0], [0], [1], [0, 0, 1, 1], [], []>} : vector<32x128xbf16>, vector<128x256xbf16>, vector<32x256xf32> -> vector<32x256xf32>
    %4 = vector.extract_strided_slice %3 {offsets = [0, 0], sizes = [32, 128], strides = [1, 1]} : vector<32x256xf32> to vector<32x128xf32>
    %c0_4 = arith.constant 0 : index
    %c0_5 = arith.constant 0 : index
    %5 = vector.load %arg4[%c0_4, %c0_5] : memref<1x128xf32, #tpu.memory_space<vmem>>, vector<1x128xf32>
    %6 = vector.broadcast %5 : vector<1x128xf32> to vector<32x128xf32>
    %7 = arith.addf %4, %6 : vector<32x128xf32>
    %cst_6 = arith.constant 0.000000e+00 : f32
    %8 = vector.broadcast %cst_6 : f32 to vector<32x128xf32>
    %9 = arith.maximumf %7, %8 : vector<32x128xf32>
    %10 = vector.extract_strided_slice %3 {offsets = [0, 128], sizes = [32, 128], strides = [1, 1]} : vector<32x256xf32> to vector<32x128xf32>
    %cst_7 = arith.constant 0.000000e+00 : f32
    %11 = vector.broadcast %cst_7 : f32 to vector<2x1x128xf32>
    %c0_8 = arith.constant 0 : index
    %c0_9 = arith.constant 0 : index
    %c0_10 = arith.constant 0 : index
    %12 = vector.load %arg7[%c0_8, %c0_9, %c0_10] : memref<2x18x128xf32, #tpu.memory_space<vmem>>, vector<2x1x128xf32>
    tpu.vector_store %arg7[%c0_8, %c0_9, %c0_10], %11 {strides = array<i32>} : memref<2x18x128xf32, #tpu.memory_space<vmem>>, vector<2x1x128xf32>,
    %cst_11 = arith.constant 0.000000e+00 : f32
    %13 = vector.broadcast %cst_11 : f32 to vector<2x1x128xf32>
    %c0_12 = arith.constant 0 : index
    %c17 = arith.constant 17 : index
    %c0_13 = arith.constant 0 : index
    %14 = vector.load %arg7[%c0_12, %c17, %c0_13] : memref<2x18x128xf32, #tpu.memory_space<vmem>>, vector<2x1x128xf32>
    tpu.vector_store %arg7[%c0_12, %c17, %c0_13], %13 {strides = array<i32>} : memref<2x18x128xf32, #tpu.memory_space<vmem>>, vector<2x1x128xf32>,
    %15 = vector.shape_cast %9 : vector<32x128xf32> to vector<2x16x128xf32>
    %c0_14 = arith.constant 0 : index
    %c1 = arith.constant 1 : index
    %c0_15 = arith.constant 0 : index
    %16 = vector.load %arg7[%c0_14, %c1, %c0_15] : memref<2x18x128xf32, #tpu.memory_space<vmem>>, vector<2x16x128xf32>
    tpu.vector_store %arg7[%c0_14, %c1, %c0_15], %15 {strides = array<i32>} : memref<2x18x128xf32, #tpu.memory_space<vmem>>, vector<2x16x128xf32>,
    %cst_16 = arith.constant 0.000000e+00 : f32
    %17 = vector.broadcast %cst_16 : f32 to vector<32x128xf32>
    %c0_17 = arith.constant 0 : index
    %c0_18 = arith.constant 0 : index
    %c0_19 = arith.constant 0 : index
    %18 = vector.load %arg7[%c0_17, %c0_18, %c0_19] : memref<2x18x128xf32, #tpu.memory_space<vmem>>, vector<2x16x128xf32>
    %19 = vector.shape_cast %18 : vector<2x16x128xf32> to vector<32x128xf32>
    %20 = arith.truncf %19 : vector<32x128xf32> to vector<32x128xbf16>
    %c0_20 = arith.constant 0 : index
    %c0_21 = arith.constant 0 : index
    %c0_22 = arith.constant 0 : index
    %21 = vector.load %arg3[%c0_20, %c0_21, %c0_22] : memref<3x128x128xbf16, #tpu.memory_space<vmem>>, vector<1x128x128xbf16>
    %22 = vector.shape_cast %21 : vector<1x128x128xbf16> to vector<128x128xbf16>
    %cst_23 = arith.constant dense<0.000000e+00> : vector<32x128xf32>
    %23 = tpu.matmul %20, %22, %cst_23 {dimension_numbers = #tpu.dot_dimension_numbers<[1], [0], [0], [1], [0, 0, 1, 1], [], []>} : vector<32x128xbf16>, vector<128x128xbf16>, vector<32x128xf32> -> vector<32x128xf32>
    %24 = arith.addf %17, %23 : vector<32x128xf32>
    %c0_24 = arith.constant 0 : index
    %c1_25 = arith.constant 1 : index
    %c0_26 = arith.constant 0 : index
    %25 = vector.load %arg7[%c0_24, %c1_25, %c0_26] : memref<2x18x128xf32, #tpu.memory_space<vmem>>, vector<2x16x128xf32>
    %26 = vector.shape_cast %25 : vector<2x16x128xf32> to vector<32x128xf32>
    %27 = arith.truncf %26 : vector<32x128xf32> to vector<32x128xbf16>
    %c1_27 = arith.constant 1 : index
    %c0_28 = arith.constant 0 : index
    %c0_29 = arith.constant 0 : index
    %28 = vector.load %arg3[%c1_27, %c0_28, %c0_29] : memref<3x128x128xbf16, #tpu.memory_space<vmem>>, vector<1x128x128xbf16>
    %29 = vector.shape_cast %28 : vector<1x128x128xbf16> to vector<128x128xbf16>
    %cst_30 = arith.constant dense<0.000000e+00> : vector<32x128xf32>
    %30 = tpu.matmul %27, %29, %cst_30 {dimension_numbers = #tpu.dot_dimension_numbers<[1], [0], [0], [1], [0, 0, 1, 1], [], []>} : vector<32x128xbf16>, vector<128x128xbf16>, vector<32x128xf32> -> vector<32x128xf32>
    %31 = arith.addf %24, %30 : vector<32x128xf32>
    %c0_31 = arith.constant 0 : index
    %c2 = arith.constant 2 : index
    %c0_32 = arith.constant 0 : index
    %32 = vector.load %arg7[%c0_31, %c2, %c0_32] : memref<2x18x128xf32, #tpu.memory_space<vmem>>, vector<2x16x128xf32>
    %33 = vector.shape_cast %32 : vector<2x16x128xf32> to vector<32x128xf32>
    %34 = arith.truncf %33 : vector<32x128xf32> to vector<32x128xbf16>
    %c2_33 = arith.constant 2 : index
    %c0_34 = arith.constant 0 : index
    %c0_35 = arith.constant 0 : index
    %35 = vector.load %arg3[%c2_33, %c0_34, %c0_35] : memref<3x128x128xbf16, #tpu.memory_space<vmem>>, vector<1x128x128xbf16>
    %36 = vector.shape_cast %35 : vector<1x128x128xbf16> to vector<128x128xbf16>
    %cst_36 = arith.constant dense<0.000000e+00> : vector<32x128xf32>
    %37 = tpu.matmul %34, %36, %cst_36 {dimension_numbers = #tpu.dot_dimension_numbers<[1], [0], [0], [1], [0, 0, 1, 1], [], []>} : vector<32x128xbf16>, vector<128x128xbf16>, vector<32x128xf32> -> vector<32x128xf32>
    %38 = arith.addf %31, %37 : vector<32x128xf32>
    %39 = arith.addf %38, %10 : vector<32x128xf32>
    %c0_37 = arith.constant 0 : index
    %c0_38 = arith.constant 0 : index
    %40 = vector.load %arg5[%c0_37, %c0_38] : memref<1x128xf32, #tpu.memory_space<vmem>>, vector<1x128xf32>
    %41 = vector.broadcast %40 : vector<1x128xf32> to vector<32x128xf32>
    %42 = arith.addf %39, %41 : vector<32x128xf32>
    %cst_39 = arith.constant 0.000000e+00 : f32
    %43 = vector.broadcast %cst_39 : f32 to vector<32x128xf32>
    %44 = arith.maximumf %42, %43 : vector<32x128xf32>
    %45 = vector.shape_cast %44 : vector<32x128xf32> to vector<2x16x128xf32>
    %46 = vector.extract_strided_slice %45 {offsets = [0, 0, 0], sizes = [1, 16, 128], strides = [1, 1, 1]} : vector<2x16x128xf32> to vector<1x16x128xf32>
    %47 = vector.shape_cast %46 : vector<1x16x128xf32> to vector<16x128xf32>
    %48 = vector.shape_cast %47 : vector<16x128xf32> to vector<8x2x128xf32>
    %cst_40 = arith.constant dense<0xFF800000> : vector<8x128xf32>
    %49 = vector.multi_reduction <maximumf>, %48, %cst_40 [1] : vector<8x2x128xf32> to vector<8x128xf32>
    %c0_41 = arith.constant 0 : index
    %c0_42 = arith.constant 0 : index
    %c0_43 = arith.constant 0 : index
    %50 = vector.load %arg6[%c0_41, %c0_42, %c0_43] : memref<2x8x128xf32, #tpu.memory_space<vmem>>, vector<1x8x128xf32>
    %51 = vector.shape_cast %50 : vector<1x8x128xf32> to vector<8x128xf32>
    %52 = vector.shape_cast %49 : vector<8x128xf32> to vector<1x8x128xf32>
    tpu.vector_store %arg6[%c0_41, %c0_42, %c0_43], %52 {strides = array<i32>} : memref<2x8x128xf32, #tpu.memory_space<vmem>>, vector<1x8x128xf32>,
    %53 = vector.extract_strided_slice %45 {offsets = [1, 0, 0], sizes = [1, 16, 128], strides = [1, 1, 1]} : vector<2x16x128xf32> to vector<1x16x128xf32>
    %54 = vector.shape_cast %53 : vector<1x16x128xf32> to vector<16x128xf32>
    %55 = vector.shape_cast %54 : vector<16x128xf32> to vector<8x2x128xf32>
    %cst_44 = arith.constant dense<0xFF800000> : vector<8x128xf32>
    %56 = vector.multi_reduction <maximumf>, %55, %cst_44 [1] : vector<8x2x128xf32> to vector<8x128xf32>
    %c1_45 = arith.constant 1 : index
    %c0_46 = arith.constant 0 : index
    %c0_47 = arith.constant 0 : index
    %57 = vector.load %arg6[%c1_45, %c0_46, %c0_47] : memref<2x8x128xf32, #tpu.memory_space<vmem>>, vector<1x8x128xf32>
    %58 = vector.shape_cast %57 : vector<1x8x128xf32> to vector<8x128xf32>
    %59 = vector.shape_cast %56 : vector<8x128xf32> to vector<1x8x128xf32>
    tpu.vector_store %arg6[%c1_45, %c0_46, %c0_47], %59 {strides = array<i32>} : memref<2x8x128xf32, #tpu.memory_space<vmem>>, vector<1x8x128xf32>,
    return
  }
  func.func @transform_0(%arg0: i32) -> (i32, i32, i32) {
    %c0_i32 = arith.constant 0 : i32
    %c0_i32_0 = arith.constant 0 : i32
    %c0_i32_1 = arith.constant 0 : i32
    return %arg0, %c0_i32, %c0_i32_0 : i32, i32, i32
  }
  func.func @transform_1(%arg0: i32) -> (i32, i32) {
    %c0_i32 = arith.constant 0 : i32
    %c0_i32_0 = arith.constant 0 : i32
    %c0_i32_1 = arith.constant 0 : i32
    return %c0_i32, %c0_i32_0 : i32, i32
  }
  func.func @transform_2(%arg0: i32) -> (i32, i32, i32) {
    %c0_i32 = arith.constant 0 : i32
    %c0_i32_0 = arith.constant 0 : i32
    %c0_i32_1 = arith.constant 0 : i32
    %c0_i32_2 = arith.constant 0 : i32
    return %c0_i32, %c0_i32_0, %c0_i32_1 : i32, i32, i32
  }
  func.func @transform_3(%arg0: i32) -> (i32, i32) {
    %c0_i32 = arith.constant 0 : i32
    %c0_i32_0 = arith.constant 0 : i32
    %c0_i32_1 = arith.constant 0 : i32
    return %c0_i32, %c0_i32_0 : i32, i32
  }
  func.func @transform_4(%arg0: i32) -> (i32, i32) {
    %c0_i32 = arith.constant 0 : i32
    %c0_i32_0 = arith.constant 0 : i32
    %c0_i32_1 = arith.constant 0 : i32
    return %c0_i32, %c0_i32_0 : i32, i32
  }
  func.func @transform_5(%arg0: i32) -> (i32, i32, i32) {
    %c0_i32 = arith.constant 0 : i32
    %c0_i32_0 = arith.constant 0 : i32
    %c0_i32_1 = arith.constant 0 : i32
    return %arg0, %c0_i32, %c0_i32_0 : i32, i32, i32
  }
}

</mosaic_0001>

<llo_original>
// kernel: residual_block_pallas.1
$region0: #{residual_block_pallas.1}
  #allocation0 [shape = 'u32[]', space=smem, size = 0x4, offset = 0x4, fixed_abs, tag = 'smem constant byte address 0x4 - core index']
  #allocation1 [shape = 'u32[144,128]{1,0:T(1,128)}', space=vmem, size = 0x12000, scoped, tag = 'internal scratch']
  #allocation2 [shape = 'f32[2,18,128]{2,1,0:T(8,128)}', space=vmem, size = 0x6000, scoped, tag = 'scratch operand']
  %s0 = inlined_call_operand.vmem [shape: bf16[2,16,128], index: 0, kind: input, shape index: {}]
  %s1 = inlined_call_operand.vmem [shape: bf16[128,256], index: 1, kind: input, shape index: {}]
  %s2 = inlined_call_operand.vmem [shape: bf16[3,128,128], index: 2, kind: input, shape index: {}]
  %s3 = inlined_call_operand.vmem [shape: f32[1,128], index: 3, kind: input, shape index: {}]
  %s4 = inlined_call_operand.vmem [shape: f32[1,128], index: 4, kind: input, shape index: {}]
  %s5 = inlined_call_operand.vmem [shape: f32[2,8,128], index: 5, kind: output, shape index: {}]
  %s6 = sld [smem:[#allocation0]]
  $region30: #{residual_block_pallas.1} parent=0
    _
  %s8 = ssub.s32 1, %s6
  %s9 = scalar_select 0, %s8, %s6
  // Predicated region
  $region2: #{residual_block_pallas.1} parent=0 // pred_check
    _
  $region3: #{residual_block_pallas.1} parent=0 // pred_check_branch
    %11 = sbr.rel (0) target = $region5
  $region4: #{residual_block_pallas.1} parent=0 // pred_region
    _
  $region5: #{residual_block_pallas.1} parent=0 // pred_fallthru
    _
  // Predicated region
  $region6: #{residual_block_pallas.1} parent=0 // pred_check
    _
  $region7: #{residual_block_pallas.1} parent=0 // pred_check_branch
    %13 = sbr.rel (0) target = $region9
  $region8: #{residual_block_pallas.1} parent=0 // pred_region
    _
  $region9: #{residual_block_pallas.1} parent=0 // pred_fallthru
    _
  // Predicated region
  $region10: #{residual_block_pallas.1} parent=0 // pred_check
    _
  $region11: #{residual_block_pallas.1} parent=0 // pred_check_branch
    %15 = sbr.rel (0) target = $region13
  $region12: #{residual_block_pallas.1} parent=0 // pred_region
    _
  $region13: #{residual_block_pallas.1} parent=0 // pred_fallthru
    _
  // Predicated region
  $region14: #{residual_block_pallas.1} parent=0 // pred_check
    _
  $region15: #{residual_block_pallas.1} parent=0 // pred_check_branch
    %17 = sbr.rel (0) target = $region17
  $region16: #{residual_block_pallas.1} parent=0 // pred_region
    _
  $region17: #{residual_block_pallas.1} parent=0 // pred_fallthru
    _
  // Predicated region
  $region18: #{residual_block_pallas.1} parent=0 // pred_check
    _
  $region19: #{residual_block_pallas.1} parent=0 // pred_check_branch
    %19 = sbr.rel (0) target = $region21
  $region20: #{residual_block_pallas.1} parent=0 // pred_region
    _
  $region21: #{residual_block_pallas.1} parent=0 // pred_fallthru
    _
  %v21 = vld [vmem:[%s0] sm:$0xf]
  %v22 = vld [vmem:[%s0 + $0x4] sm:$0xf]
  %v23 = vld [vmem:[%s0 + $0x8] sm:$0xf]
  %v24 = vld [vmem:[%s0 + $0xc] sm:$0xf]
  %v25 = vld [vmem:[%s1] sm:$0xff]
  %v26 = vld [vmem:[%s1 + $0x8] sm:$0xff]
  %v27 = vld [vmem:[%s1 + $0x10] sm:$0xff]
  %v28 = vld [vmem:[%s1 + $0x18] sm:$0xff]
  %v29 = vld [vmem:[%s1 + $0x20] sm:$0xff]
  %v30 = vld [vmem:[%s1 + $0x28] sm:$0xff]
  %v31 = vld [vmem:[%s1 + $0x30] sm:$0xff]
  %v32 = vld [vmem:[%s1 + $0x38] sm:$0xff]
  %v33 = vld [vmem:[%s1 + $0x40] sm:$0xff]
  %v34 = vld [vmem:[%s1 + $0x48] sm:$0xff]
  %v35 = vld [vmem:[%s1 + $0x50] sm:$0xff]
  %v36 = vld [vmem:[%s1 + $0x58] sm:$0xff]
  %v37 = vld [vmem:[%s1 + $0x60] sm:$0xff]
  %v38 = vld [vmem:[%s1 + $0x68] sm:$0xff]
  %v39 = vld [vmem:[%s1 + $0x70] sm:$0xff]
  %v40 = vld [vmem:[%s1 + $0x78] sm:$0xff]
  %v45 = vunpack.c.l.b16 %v21
  %v46 = vunpack.c.l.b16 %v22
  %v47 = vunpack.c.l.b16 %v23
  %v48 = vunpack.c.l.b16 %v24
  %v49 = vpack.c.b16 %v46, %v45
  %v50 = vpack.c.b16 %v48, %v47
  %v69 = vunpack.c.l.b16 %v25
  %v70 = vunpack.c.h.b16 %v25
  %v71 = vunpack.c.l.b16 %v26
  %v72 = vunpack.c.h.b16 %v26
  %v73 = vunpack.c.l.b16 %v27
  %v74 = vunpack.c.h.b16 %v27
  %v75 = vunpack.c.l.b16 %v28
  %v76 = vunpack.c.h.b16 %v28
  %v77 = vunpack.c.l.b16 %v29
  %v78 = vunpack.c.h.b16 %v29
  %v79 = vunpack.c.l.b16 %v30
  %v80 = vunpack.c.h.b16 %v30
  %v81 = vunpack.c.l.b16 %v31
  %v82 = vunpack.c.h.b16 %v31
  %v83 = vunpack.c.l.b16 %v32
  %v84 = vunpack.c.h.b16 %v32
  %v85 = vunpack.c.l.b16 %v33
  %v86 = vunpack.c.h.b16 %v33
  %v87 = vunpack.c.l.b16 %v34
  %v88 = vunpack.c.h.b16 %v34
  %v89 = vunpack.c.l.b16 %v35
  %v90 = vunpack.c.h.b16 %v35
  %v91 = vunpack.c.l.b16 %v36
  %v92 = vunpack.c.h.b16 %v36
  %v93 = vunpack.c.l.b16 %v37
  %v94 = vunpack.c.h.b16 %v37
  %v95 = vunpack.c.l.b16 %v38
  %v96 = vunpack.c.h.b16 %v38
  %v97 = vunpack.c.l.b16 %v39
  %v98 = vunpack.c.h.b16 %v39
  %v99 = vunpack.c.l.b16 %v40
  %v100 = vunpack.c.h.b16 %v40
  %v101 = vpack.c.b16 %v71, %v69
  %v102 = vpack.c.b16 %v72, %v70
  %v103 = vpack.c.b16 %v75, %v73
  %v104 = vpack.c.b16 %v76, %v74
  %v105 = vpack.c.b16 %v79, %v77
  %v106 = vpack.c.b16 %v80, %v78
  %v107 = vpack.c.b16 %v83, %v81
  %v108 = vpack.c.b16 %v84, %v82
  %v109 = vpack.c.b16 %v87, %v85
  %v110 = vpack.c.b16 %v88, %v86
  %v111 = vpack.c.b16 %v91, %v89
  %v112 = vpack.c.b16 %v92, %v90
  %v113 = vpack.c.b16 %v95, %v93
  %v114 = vpack.c.b16 %v96, %v94
  %v115 = vpack.c.b16 %v99, %v97
  %v116 = vpack.c.b16 %v100, %v98
  %133 = vmatprep.subr.bf16.mxu0 %v102
  %134 = vmatpush1.bf16.msra.mxu0 %v101
  %135 = vmatprep.subr.bf16.mxu0 %v104
  %136 = vmatpush1.bf16.msra.mxu0 %v103
  %137 = vmatprep.subr.bf16.mxu0 %v106
  %138 = vmatpush1.bf16.msra.mxu0 %v105
  %139 = vmatprep.subr.bf16.mxu0 %v108
  %140 = vmatpush1.bf16.msra.mxu0 %v107
  %141 = vmatprep.subr.bf16.mxu0 %v110
  %142 = vmatpush1.bf16.msra.mxu0 %v109
  %143 = vmatprep.subr.bf16.mxu0 %v112
  %144 = vmatpush1.bf16.msra.mxu0 %v111
  %145 = vmatprep.subr.bf16.mxu0 %v114
  %146 = vmatpush1.bf16.msra.mxu0 %v113
  %147 = vmatprep.subr.bf16.mxu0 %v116
  %148 = vmatpush1.bf16.msra.mxu0 %v115
  %149 = vmatprep.subr.bf16.mxu0 0
  %150 = vmatpush1.bf16.msra.mxu0 0
  %151 = vmatprep.subr.bf16.mxu0 0
  %152 = vmatpush1.bf16.msra.mxu0 0
  %153 = vmatprep.subr.bf16.mxu0 0
  %154 = vmatpush1.bf16.msra.mxu0 0
  %155 = vmatprep.subr.bf16.mxu0 0
  %156 = vmatpush1.bf16.msra.mxu0 0
  %157 = vmatprep.subr.bf16.mxu0 0
  %158 = vmatpush1.bf16.msra.mxu0 0
  %159 = vmatprep.subr.bf16.mxu0 0
  %160 = vmatpush1.bf16.msra.mxu0 0
  %161 = vmatprep.subr.bf16.mxu0 0
  %162 = vmatpush1.bf16.msra.mxu0 0
  %163 = vmatprep.subr.bf16.mxu0 0
  %164 = vmatpush1.bf16.msra.mxu0 0
  %165 = vmatprep.mubr.bf16.mxu0 0
  %166 = vmatmul.mubr.bf16.gmra.mrb[0].mxu0 %v49
  %v167 = vpop.f32.mrb[0].mxu0
  %v168 = vadd.f32 0.0, %v167
  %v169 = vpop.f32.mrb[0].mxu0
  %v170 = vadd.f32 0.0, %v169
  %v171 = vpop.f32.mrb[0].mxu0
  %v172 = vadd.f32 0.0, %v171
  %v173 = vpop.f32.mrb[0].mxu0
  %v174 = vadd.f32 0.0, %v173
  %175 = vmatprep.mubr.bf16.mxu0 0
  %176 = vmatmul.mubr.bf16.gmra.mrb[0].mxu0 %v50
  %v177 = vpop.f32.mrb[0].mxu0
  %v178 = vadd.f32 0.0, %v177
  %v179 = vpop.f32.mrb[0].mxu0
  %v180 = vadd.f32 0.0, %v179
  %v181 = vpop.f32.mrb[0].mxu0
  %v182 = vadd.f32 0.0, %v181
  %v183 = vpop.f32.mrb[0].mxu0
  %v184 = vadd.f32 0.0, %v183
  %185 = vdwg.mxu0
  %v186 = vld [vmem:[%s3] sm:$0x1]
  %v188 = vlaneseq
  %v189 = vshrl.u32 %v188, 7
  %v190 = vsub.s32 0, %v189
  %v191 = vrot.slane %v186, %v190
  %v193 = vadd.f32 %v168, %v191
  %v194 = vadd.f32 %v172, %v191
  %v195 = vadd.f32 %v178, %v191
  %v196 = vadd.f32 %v182, %v191
  %v197 = vmax.f32 %v193, 0.0
  %v198 = vmax.f32 %v194, 0.0
  %v199 = vmax.f32 %v195, 0.0
  %v200 = vmax.f32 %v196, 0.0
  %201 = vst [vmem:[#allocation2] sm:$0x1] 0.0
  %202 = vst [vmem:[#allocation2 + $0x18] sm:$0x1] 0.0
  %203 = vst [vmem:[#allocation2 + $0x11] sm:$0x1] 0.0
  %204 = vst [vmem:[#allocation2 + $0x29] sm:$0x1] 0.0
  %205 = vst [vmem:[#allocation2 + $0x1] sm:$0xff] %v197
  %206 = vst [vmem:[#allocation2 + $0x9] sm:$0xff] %v198
  %207 = vst [vmem:[#allocation2 + $0x19] sm:$0xff] %v199
  %208 = vst [vmem:[#allocation2 + $0x21] sm:$0xff] %v200
  %v209 = vld [vmem:[#allocation2] sm:$0xff]
  %v210 = vld [vmem:[#allocation2 + $0x8] sm:$0xff]
  %v211 = vld [vmem:[#allocation2 + $0x18] sm:$0xff]
  %v212 = vld [vmem:[#allocation2 + $0x20] sm:$0xff]
  %v213 = vpack.c.bf16 %v210, %v209
  %v214 = vpack.c.bf16 %v212, %v211
  %v215 = vld [vmem:[%s2] sm:$0xf]
  %v216 = vld [vmem:[%s2 + $0x4] sm:$0xf]
  %v217 = vld [vmem:[%s2 + $0x8] sm:$0xf]
  %v218 = vld [vmem:[%s2 + $0xc] sm:$0xf]
  %v219 = vld [vmem:[%s2 + $0x10] sm:$0xf]
  %v220 = vld [vmem:[%s2 + $0x14] sm:$0xf]
  %v221 = vld [vmem:[%s2 + $0x18] sm:$0xf]
  %v222 = vld [vmem:[%s2 + $0x1c] sm:$0xf]
  %v223 = vld [vmem:[%s2 + $0x20] sm:$0xf]
  %v224 = vld [vmem:[%s2 + $0x24] sm:$0xf]
  %v225 = vld [vmem:[%s2 + $0x28] sm:$0xf]
  %v226 = vld [vmem:[%s2 + $0x2c] sm:$0xf]
  %v227 = vld [vmem:[%s2 + $0x30] sm:$0xf]
  %v228 = vld [vmem:[%s2 + $0x34] sm:$0xf]
  %v229 = vld [vmem:[%s2 + $0x38] sm:$0xf]
  %v230 = vld [vmem:[%s2 + $0x3c] sm:$0xf]
  %v231 = vld [vmem:[#allocation2 + $0x1] sm:$0xff]
  %v232 = vld [vmem:[#allocation2 + $0x9] sm:$0xff]
  %v233 = vld [vmem:[#allocation2 + $0x19] sm:$0xff]
  %v234 = vld [vmem:[#allocation2 + $0x21] sm:$0xff]
  %v235 = vpack.c.bf16 %v232, %v231
  %v236 = vpack.c.bf16 %v234, %v233
  %s237 = scalar_lea.vmem %s2, 64
  %v238 = vld [vmem:[%s237] sm:$0xf]
  %v239 = vld [vmem:[%s237 + $0x4] sm:$0xf]
  %v240 = vld [vmem:[%s237 + $0x8] sm:$0xf]
  %v241 = vld [vmem:[%s237 + $0xc] sm:$0xf]
  %v242 = vld [vmem:[%s237 + $0x10] sm:$0xf]
  %v243 = vld [vmem:[%s237 + $0x14] sm:$0xf]
  %v244 = vld [vmem:[%s237 + $0x18] sm:$0xf]
  %v245 = vld [vmem:[%s237 + $0x1c] sm:$0xf]
  %v246 = vld [vmem:[%s237 + $0x20] sm:$0xf]
  %v247 = vld [vmem:[%s237 + $0x24] sm:$0xf]
  %v248 = vld [vmem:[%s237 + $0x28] sm:$0xf]
  %v249 = vld [vmem:[%s237 + $0x2c] sm:$0xf]
  %v250 = vld [vmem:[%s237 + $0x30] sm:$0xf]
  %v251 = vld [vmem:[%s237 + $0x34] sm:$0xf]
  %v252 = vld [vmem:[%s237 + $0x38] sm:$0xf]
  %v253 = vld [vmem:[%s237 + $0x3c] sm:$0xf]
  %v270 = vunpack.c.l.b16 %v238
  %v271 = vunpack.c.l.b16 %v239
  %v272 = vunpack.c.l.b16 %v240
  %v273 = vunpack.c.l.b16 %v241
  %v274 = vunpack.c.l.b16 %v242
  %v275 = vunpack.c.l.b16 %v243
  %v276 = vunpack.c.l.b16 %v244
  %v277 = vunpack.c.l.b16 %v245
  %v278 = vunpack.c.l.b16 %v246
  %v279 = vunpack.c.l.b16 %v247
  %v280 = vunpack.c.l.b16 %v248
  %v281 = vunpack.c.l.b16 %v249
  %v282 = vunpack.c.l.b16 %v250
  %v283 = vunpack.c.l.b16 %v251
  %v284 = vunpack.c.l.b16 %v252
  %v285 = vunpack.c.l.b16 %v253
  %v286 = vpack.c.b16 %v271, %v270
  %v287 = vpack.c.b16 %v273, %v272
  %v288 = vpack.c.b16 %v275, %v274
  %v289 = vpack.c.b16 %v277, %v276
  %v290 = vpack.c.b16 %v279, %v278
  %v291 = vpack.c.b16 %v281, %v280
  %v292 = vpack.c.b16 %v283, %v282
  %v293 = vpack.c.b16 %v285, %v284
  %302 = vmatprep.subr.bf16.mxu0 0
  %303 = vmatpush1.bf16.msra.mxu0 %v286
  %304 = vmatprep.subr.bf16.mxu0 0
  %305 = vmatpush1.bf16.msra.mxu0 %v287
  %306 = vmatprep.subr.bf16.mxu0 0
  %307 = vmatpush1.bf16.msra.mxu0 %v288
  %308 = vmatprep.subr.bf16.mxu0 0
  %309 = vmatpush1.bf16.msra.mxu0 %v289
  %310 = vmatprep.subr.bf16.mxu0 0
  %311 = vmatpush1.bf16.msra.mxu0 %v290
  %312 = vmatprep.subr.bf16.mxu0 0
  %313 = vmatpush1.bf16.msra.mxu0 %v291
  %314 = vmatprep.subr.bf16.mxu0 0
  %315 = vmatpush1.bf16.msra.mxu0 %v292
  %316 = vmatprep.subr.bf16.mxu0 0
  %317 = vmatpush1.bf16.msra.mxu0 %v293
  %318 = vmatprep.subr.bf16.mxu0 0
  %319 = vmatpush1.bf16.msra.mxu0 0
  %320 = vmatprep.subr.bf16.mxu0 0
  %321 = vmatpush1.bf16.msra.mxu0 0
  %322 = vmatprep.subr.bf16.mxu0 0
  %323 = vmatpush1.bf16.msra.mxu0 0
  %324 = vmatprep.subr.bf16.mxu0 0
  %325 = vmatpush1.bf16.msra.mxu0 0
  %326 = vmatprep.subr.bf16.mxu0 0
  %327 = vmatpush1.bf16.msra.mxu0 0
  %328 = vmatprep.subr.bf16.mxu0 0
  %329 = vmatpush1.bf16.msra.mxu0 0
  %330 = vmatprep.subr.bf16.mxu0 0
  %331 = vmatpush1.bf16.msra.mxu0 0
  %332 = vmatprep.subr.bf16.mxu0 0
  %333 = vmatpush1.bf16.msra.mxu0 0
  %334 = vmatprep.mubr.bf16.mxu0 0
  %335 = vmatmul.mubr.bf16.gmra.mrb[0].mxu0 %v235
  %v336 = vpop.f32.mrb[0].mxu0
  %v337 = vadd.f32 0.0, %v336
  %v338 = vpop.f32.mrb[0].mxu0
  %v339 = vpop.f32.mrb[0].mxu0
  %v340 = vadd.f32 0.0, %v339
  %v341 = vpop.f32.mrb[0].mxu0
  %342 = vmatprep.mubr.bf16.mxu0 0
  %343 = vmatmul.mubr.bf16.gmra.mrb[0].mxu0 %v236
  %v344 = vpop.f32.mrb[0].mxu0
  %v345 = vadd.f32 0.0, %v344
  %v346 = vpop.f32.mrb[0].mxu0
  %v347 = vpop.f32.mrb[0].mxu0
  %v348 = vadd.f32 0.0, %v347
  %v349 = vpop.f32.mrb[0].mxu0
  %350 = vdwg.mxu0
  %v367 = vunpack.c.l.b16 %v215
  %v368 = vunpack.c.l.b16 %v216
  %v369 = vunpack.c.l.b16 %v217
  %v370 = vunpack.c.l.b16 %v218
  %v371 = vunpack.c.l.b16 %v219
  %v372 = vunpack.c.l.b16 %v220
  %v373 = vunpack.c.l.b16 %v221
  %v374 = vunpack.c.l.b16 %v222
  %v375 = vunpack.c.l.b16 %v223
  %v376 = vunpack.c.l.b16 %v224
  %v377 = vunpack.c.l.b16 %v225
  %v378 = vunpack.c.l.b16 %v226
  %v379 = vunpack.c.l.b16 %v227
  %v380 = vunpack.c.l.b16 %v228
  %v381 = vunpack.c.l.b16 %v229
  %v382 = vunpack.c.l.b16 %v230
  %v383 = vpack.c.b16 %v368, %v367
  %v384 = vpack.c.b16 %v370, %v369
  %v385 = vpack.c.b16 %v372, %v371
  %v386 = vpack.c.b16 %v374, %v373
  %v387 = vpack.c.b16 %v376, %v375
  %v388 = vpack.c.b16 %v378, %v377
  %v389 = vpack.c.b16 %v380, %v379
  %v390 = vpack.c.b16 %v382, %v381
  %399 = vmatprep.subr.bf16.mxu0 0
  %400 = vmatpush1.bf16.msra.mxu0 %v383
  %401 = vmatprep.subr.bf16.mxu0 0
  %402 = vmatpush1.bf16.msra.mxu0 %v384
  %403 = vmatprep.subr.bf16.mxu0 0
  %404 = vmatpush1.bf16.msra.mxu0 %v385
  %405 = vmatprep.subr.bf16.mxu0 0
  %406 = vmatpush1.bf16.msra.mxu0 %v386
  %407 = vmatprep.subr.bf16.mxu0 0
  %408 = vmatpush1.bf16.msra.mxu0 %v387
  %409 = vmatprep.subr.bf16.mxu0 0
  %410 = vmatpush1.bf16.msra.mxu0 %v388
  %411 = vmatprep.subr.bf16.mxu0 0
  %412 = vmatpush1.bf16.msra.mxu0 %v389
  %413 = vmatprep.subr.bf16.mxu0 0
  %414 = vmatpush1.bf16.msra.mxu0 %v390
  %415 = vmatprep.subr.bf16.mxu0 0
  %416 = vmatpush1.bf16.msra.mxu0 0
  %417 = vmatprep.subr.bf16.mxu0 0
  %418 = vmatpush1.bf16.msra.mxu0 0
  %419 = vmatprep.subr.bf16.mxu0 0
  %420 = vmatpush1.bf16.msra.mxu0 0
  %421 = vmatprep.subr.bf16.mxu0 0
  %422 = vmatpush1.bf16.msra.mxu0 0
  %423 = vmatprep.subr.bf16.mxu0 0
  %424 = vmatpush1.bf16.msra.mxu0 0
  %425 = vmatprep.subr.bf16.mxu0 0
  %426 = vmatpush1.bf16.msra.mxu0 0
  %427 = vmatprep.subr.bf16.mxu0 0
  %428 = vmatpush1.bf16.msra.mxu0 0
  %429 = vmatprep.subr.bf16.mxu0 0
  %430 = vmatpush1.bf16.msra.mxu0 0
  %431 = vmatprep.mubr.bf16.mxu0 0
  %432 = vmatmul.mubr.bf16.gmra.mrb[0].mxu0 %v213
  %v433 = vpop.f32.mrb[0].mxu0
  %v434 = vadd.f32 %v337, %v433
  %v435 = vpop.f32.mrb[0].mxu0
  %v436 = vpop.f32.mrb[0].mxu0
  %v437 = vadd.f32 %v340, %v436
  %v438 = vpop.f32.mrb[0].mxu0
  %439 = vmatprep.mubr.bf16.mxu0 0
  %440 = vmatmul.mubr.bf16.gmra.mrb[0].mxu0 %v214
  %v441 = vpop.f32.mrb[0].mxu0
  %v442 = vadd.f32 %v345, %v441
  %v443 = vpop.f32.mrb[0].mxu0
  %v444 = vpop.f32.mrb[0].mxu0
  %v445 = vadd.f32 %v348, %v444
  %v446 = vpop.f32.mrb[0].mxu0
  %447 = vdwg.mxu0
  %v448 = vld [vmem:[#allocation2 + $0x2] sm:$0xff]
  %v449 = vld [vmem:[#allocation2 + $0xa] sm:$0xff]
  %v450 = vld [vmem:[#allocation2 + $0x1a] sm:$0xff]
  %v451 = vld [vmem:[#allocation2 + $0x22] sm:$0xff]
  %v452 = vpack.c.bf16 %v449, %v448
  %v453 = vpack.c.bf16 %v451, %v450
  %s454 = scalar_lea.vmem %s2, 128
  %v455 = vld [vmem:[%s454] sm:$0xf]
  %v456 = vld [vmem:[%s454 + $0x4] sm:$0xf]
  %v457 = vld [vmem:[%s454 + $0x8] sm:$0xf]
  %v458 = vld [vmem:[%s454 + $0xc] sm:$0xf]
  %v459 = vld [vmem:[%s454 + $0x10] sm:$0xf]
  %v460 = vld [vmem:[%s454 + $0x14] sm:$0xf]
  %v461 = vld [vmem:[%s454 + $0x18] sm:$0xf]
  %v462 = vld [vmem:[%s454 + $0x1c] sm:$0xf]
  %v463 = vld [vmem:[%s454 + $0x20] sm:$0xf]
  %v464 = vld [vmem:[%s454 + $0x24] sm:$0xf]
  %v465 = vld [vmem:[%s454 + $0x28] sm:$0xf]
  %v466 = vld [vmem:[%s454 + $0x2c] sm:$0xf]
  %v467 = vld [vmem:[%s454 + $0x30] sm:$0xf]
  %v468 = vld [vmem:[%s454 + $0x34] sm:$0xf]
  %v469 = vld [vmem:[%s454 + $0x38] sm:$0xf]
  %v470 = vld [vmem:[%s454 + $0x3c] sm:$0xf]
  %v487 = vunpack.c.l.b16 %v455
  %v488 = vunpack.c.l.b16 %v456
  %v489 = vunpack.c.l.b16 %v457
  %v490 = vunpack.c.l.b16 %v458
  %v491 = vunpack.c.l.b16 %v459
  %v492 = vunpack.c.l.b16 %v460
  %v493 = vunpack.c.l.b16 %v461
  %v494 = vunpack.c.l.b16 %v462
  %v495 = vunpack.c.l.b16 %v463
  %v496 = vunpack.c.l.b16 %v464
  %v497 = vunpack.c.l.b16 %v465
  %v498 = vunpack.c.l.b16 %v466
  %v499 = vunpack.c.l.b16 %v467
  %v500 = vunpack.c.l.b16 %v468
  %v501 = vunpack.c.l.b16 %v469
  %v502 = vunpack.c.l.b16 %v470
  %v503 = vpack.c.b16 %v488, %v487
  %v504 = vpack.c.b16 %v490, %v489
  %v505 = vpack.c.b16 %v492, %v491
  %v506 = vpack.c.b16 %v494, %v493
  %v507 = vpack.c.b16 %v496, %v495
  %v508 = vpack.c.b16 %v498, %v497
  %v509 = vpack.c.b16 %v500, %v499
  %v510 = vpack.c.b16 %v502, %v501
  %519 = vmatprep.subr.bf16.mxu0 0
  %520 = vmatpush1.bf16.msra.mxu0 %v503
  %521 = vmatprep.subr.bf16.mxu0 0
  %522 = vmatpush1.bf16.msra.mxu0 %v504
  %523 = vmatprep.subr.bf16.mxu0 0
  %524 = vmatpush1.bf16.msra.mxu0 %v505
  %525 = vmatprep.subr.bf16.mxu0 0
  %526 = vmatpush1.bf16.msra.mxu0 %v506
  %527 = vmatprep.subr.bf16.mxu0 0
  %528 = vmatpush1.bf16.msra.mxu0 %v507
  %529 = vmatprep.subr.bf16.mxu0 0
  %530 = vmatpush1.bf16.msra.mxu0 %v508
  %531 = vmatprep.subr.bf16.mxu0 0
  %532 = vmatpush1.bf16.msra.mxu0 %v509
  %533 = vmatprep.subr.bf16.mxu0 0
  %534 = vmatpush1.bf16.msra.mxu0 %v510
  %535 = vmatprep.subr.bf16.mxu0 0
  %536 = vmatpush1.bf16.msra.mxu0 0
  %537 = vmatprep.subr.bf16.mxu0 0
  %538 = vmatpush1.bf16.msra.mxu0 0
  %539 = vmatprep.subr.bf16.mxu0 0
  %540 = vmatpush1.bf16.msra.mxu0 0
  %541 = vmatprep.subr.bf16.mxu0 0
  %542 = vmatpush1.bf16.msra.mxu0 0
  %543 = vmatprep.subr.bf16.mxu0 0
  %544 = vmatpush1.bf16.msra.mxu0 0
  %545 = vmatprep.subr.bf16.mxu0 0
  %546 = vmatpush1.bf16.msra.mxu0 0
  %547 = vmatprep.subr.bf16.mxu0 0
  %548 = vmatpush1.bf16.msra.mxu0 0
  %549 = vmatprep.subr.bf16.mxu0 0
  %550 = vmatpush1.bf16.msra.mxu0 0
  %551 = vmatprep.mubr.bf16.mxu0 0
  %552 = vmatmul.mubr.bf16.gmra.mrb[0].mxu0 %v452
  %v553 = vpop.f32.mrb[0].mxu0
  %v554 = vadd.f32 0.0, %v553
  %v555 = vpop.f32.mrb[0].mxu0
  %v556 = vpop.f32.mrb[0].mxu0
  %v557 = vadd.f32 0.0, %v556
  %v558 = vpop.f32.mrb[0].mxu0
  %559 = vmatprep.mubr.bf16.mxu0 0
  %560 = vmatmul.mubr.bf16.gmra.mrb[0].mxu0 %v453
  %v561 = vpop.f32.mrb[0].mxu0
  %v562 = vadd.f32 0.0, %v561
  %v563 = vpop.f32.mrb[0].mxu0
  %v564 = vpop.f32.mrb[0].mxu0
  %v565 = vadd.f32 0.0, %v564
  %v566 = vpop.f32.mrb[0].mxu0
  %567 = vdwg.mxu0
  %v568 = vadd.f32 %v434, %v554
  %v569 = vadd.f32 %v437, %v557
  %v570 = vadd.f32 %v442, %v562
  %v571 = vadd.f32 %v445, %v565
  %v572 = vadd.f32 %v568, %v170
  %v573 = vadd.f32 %v569, %v174
  %v574 = vadd.f32 %v570, %v180
  %v575 = vadd.f32 %v571, %v184
  %v576 = vld [vmem:[%s4] sm:$0x1]
  %v578 = vlaneseq
  %v579 = vshrl.u32 %v578, 7
  %v580 = vsub.s32 0, %v579
  %v581 = vrot.slane %v576, %v580
  %v583 = vadd.f32 %v572, %v581
  %v584 = vadd.f32 %v573, %v581
  %v585 = vadd.f32 %v574, %v581
  %v586 = vadd.f32 %v575, %v581
  %v587 = vmax.f32 %v583, 0.0
  %v588 = vmax.f32 %v584, 0.0
  %v589 = vmax.f32 %v585, 0.0
  %v590 = vmax.f32 %v586, 0.0
  %v593 = vcombine.high %v587, %v587
  %v595 = vunpack.c.l.s4 1983009808
  %v596 = vunpack.c.0.s8 %v595
  %v597 = vlaneseq
  %v598 = vshrl.u32 %v597, 7
  %v599 = vsub.s32 %v596, %v598
  %v600 = vrot.slane %v587, %v599
  %v602 = vunpack.c.l.s4 1983009808
  %v603 = vunpack.c.0.s8 %v602
  %v604 = vlaneseq
  %v605 = vshrl.u32 %v604, 7
  %v606 = vsub.s32 %v603, %v605
  %v607 = vrot.slane %v593, %v606
  %v608 = vcombine.high %v600, %v600
  %v609 = vcombine.high %v607, %v607
  %v610 = vcombine.high %v588, %v588
  %v612 = vunpack.c.l.s4 1983009808
  %v613 = vunpack.c.0.s8 %v612
  %v614 = vlaneseq
  %v615 = vshrl.u32 %v614, 7
  %v616 = vsub.s32 %v613, %v615
  %v617 = vrot.slane %v588, %v616
  %v619 = vunpack.c.l.s4 1983009808
  %v620 = vunpack.c.0.s8 %v619
  %v621 = vlaneseq
  %v622 = vshrl.u32 %v621, 7
  %v623 = vsub.s32 %v620, %v622
  %v624 = vrot.slane %v610, %v623
  %v625 = vcombine.high %v617, %v617
  %v626 = vcombine.high %v624, %v624
  %vm635 = vcmask 1041408
  %v636 = vsel %vm635, %v600, -inf
  %v637 = vrot.slane %v636, 4
  %v638 = vmax.f32 %v636, %v637
  %v639 = vrot.slane %v638, 2
  %v640 = vmax.f32 %v638, %v639
  %v641 = vrot.slane %v640, 1
  %v642 = vmax.f32 %v640, %v641
  %v643 = vsel %vm635, %v608, -inf
  %v644 = vrot.slane %v643, 4
  %v645 = vmax.f32 %v643, %v644
  %v646 = vrot.slane %v645, 2
  %v647 = vmax.f32 %v645, %v646
  %v648 = vrot.slane %v647, 1
  %v649 = vmax.f32 %v647, %v648
  %v650 = vsel %vm635, %v607, -inf
  %v651 = vrot.slane %v650, 4
  %v652 = vmax.f32 %v650, %v651
  %v653 = vrot.slane %v652, 2
  %v654 = vmax.f32 %v652, %v653
  %v655 = vrot.slane %v654, 1
  %v656 = vmax.f32 %v654, %v655
  %v657 = vsel %vm635, %v609, -inf
  %v658 = vrot.slane %v657, 4
  %v659 = vmax.f32 %v657, %v658
  %v660 = vrot.slane %v659, 2
  %v661 = vmax.f32 %v659, %v660
  %v662 = vrot.slane %v661, 1
  %v663 = vmax.f32 %v661, %v662
  %v664 = vsel %vm635, %v617, -inf
  %v665 = vrot.slane %v664, 4
  %v666 = vmax.f32 %v664, %v665
  %v667 = vrot.slane %v666, 2
  %v668 = vmax.f32 %v666, %v667
  %v669 = vrot.slane %v668, 1
  %v670 = vmax.f32 %v668, %v669
  %v671 = vsel %vm635, %v625, -inf
  %v672 = vrot.slane %v671, 4
  %v673 = vmax.f32 %v671, %v672
  %v674 = vrot.slane %v673, 2
  %v675 = vmax.f32 %v673, %v674
  %v676 = vrot.slane %v675, 1
  %v677 = vmax.f32 %v675, %v676
  %v678 = vsel %vm635, %v624, -inf
  %v679 = vrot.slane %v678, 4
  %v680 = vmax.f32 %v678, %v679
  %v681 = vrot.slane %v680, 2
  %v682 = vmax.f32 %v680, %v681
  %v683 = vrot.slane %v682, 1
  %v684 = vmax.f32 %v682, %v683
  %v685 = vsel %vm635, %v626, -inf
  %v686 = vrot.slane %v685, 4
  %v687 = vmax.f32 %v685, %v686
  %v688 = vrot.slane %v687, 2
  %v689 = vmax.f32 %v687, %v688
  %v690 = vrot.slane %v689, 1
  %v691 = vmax.f32 %v689, %v690
  %vm700 = vcmask 1041409
  %v701 = vsel %vm700, %v649, %v642
  %vm702 = vcmask 1042434
  %v703 = vsel %vm702, %v656, %v701
  %vm704 = vcmask 1043459
  %v705 = vsel %vm704, %v663, %v703
  %vm706 = vcmask 1044484
  %v707 = vsel %vm706, %v670, %v705
  %vm708 = vcmask 1045509
  %v709 = vsel %vm708, %v677, %v707
  %vm710 = vcmask 1046534
  %v711 = vsel %vm710, %v684, %v709
  %vm712 = vcmask 1047559
  %v713 = vsel %vm712, %v691, %v711
  %715 = vst [vmem:[%s5] sm:$0xff] %v713
  %v718 = vcombine.high %v589, %v589
  %v720 = vunpack.c.l.s4 1983009808
  %v721 = vunpack.c.0.s8 %v720
  %v722 = vlaneseq
  %v723 = vshrl.u32 %v722, 7
  %v724 = vsub.s32 %v721, %v723
  %v725 = vrot.slane %v589, %v724
  %v727 = vunpack.c.l.s4 1983009808
  %v728 = vunpack.c.0.s8 %v727
  %v729 = vlaneseq
  %v730 = vshrl.u32 %v729, 7
  %v731 = vsub.s32 %v728, %v730
  %v732 = vrot.slane %v718, %v731
  %v733 = vcombine.high %v725, %v725
  %v734 = vcombine.high %v732, %v732
  %v735 = vcombine.high %v590, %v590
  %v737 = vunpack.c.l.s4 1983009808
  %v738 = vunpack.c.0.s8 %v737
  %v739 = vlaneseq
  %v740 = vshrl.u32 %v739, 7
  %v741 = vsub.s32 %v738, %v740
  %v742 = vrot.slane %v590, %v741
  %v744 = vunpack.c.l.s4 1983009808
  %v745 = vunpack.c.0.s8 %v744
  %v746 = vlaneseq
  %v747 = vshrl.u32 %v746, 7
  %v748 = vsub.s32 %v745, %v747
  %v749 = vrot.slane %v735, %v748
  %v750 = vcombine.high %v742, %v742
  %v751 = vcombine.high %v749, %v749
  %v760 = vsel %vm635, %v725, -inf
  %v761 = vrot.slane %v760, 4
  %v762 = vmax.f32 %v760, %v761
  %v763 = vrot.slane %v762, 2
  %v764 = vmax.f32 %v762, %v763
  %v765 = vrot.slane %v764, 1
  %v766 = vmax.f32 %v764, %v765
  %v767 = vsel %vm635, %v733, -inf
  %v768 = vrot.slane %v767, 4
  %v769 = vmax.f32 %v767, %v768
  %v770 = vrot.slane %v769, 2
  %v771 = vmax.f32 %v769, %v770
  %v772 = vrot.slane %v771, 1
  %v773 = vmax.f32 %v771, %v772
  %v774 = vsel %vm635, %v732, -inf
  %v775 = vrot.slane %v774, 4
  %v776 = vmax.f32 %v774, %v775
  %v777 = vrot.slane %v776, 2
  %v778 = vmax.f32 %v776, %v777
  %v779 = vrot.slane %v778, 1
  %v780 = vmax.f32 %v778, %v779
  %v781 = vsel %vm635, %v734, -inf
  %v782 = vrot.slane %v781, 4
  %v783 = vmax.f32 %v781, %v782
  %v784 = vrot.slane %v783, 2
  %v785 = vmax.f32 %v783, %v784
  %v786 = vrot.slane %v785, 1
  %v787 = vmax.f32 %v785, %v786
  %v788 = vsel %vm635, %v742, -inf
  %v789 = vrot.slane %v788, 4
  %v790 = vmax.f32 %v788, %v789
  %v791 = vrot.slane %v790, 2
  %v792 = vmax.f32 %v790, %v791
  %v793 = vrot.slane %v792, 1
  %v794 = vmax.f32 %v792, %v793
  %v795 = vsel %vm635, %v750, -inf
  %v796 = vrot.slane %v795, 4
  %v797 = vmax.f32 %v795, %v796
  %v798 = vrot.slane %v797, 2
  %v799 = vmax.f32 %v797, %v798
  %v800 = vrot.slane %v799, 1
  %v801 = vmax.f32 %v799, %v800
  %v802 = vsel %vm635, %v749, -inf
  %v803 = vrot.slane %v802, 4
  %v804 = vmax.f32 %v802, %v803
  %v805 = vrot.slane %v804, 2
  %v806 = vmax.f32 %v804, %v805
  %v807 = vrot.slane %v806, 1
  %v808 = vmax.f32 %v806, %v807
  %v809 = vsel %vm635, %v751, -inf
  %v810 = vrot.slane %v809, 4
  %v811 = vmax.f32 %v809, %v810
  %v812 = vrot.slane %v811, 2
  %v813 = vmax.f32 %v811, %v812
  %v814 = vrot.slane %v813, 1
  %v815 = vmax.f32 %v813, %v814
  %v824 = vsel %vm700, %v773, %v766
  %v825 = vsel %vm702, %v780, %v824
  %v826 = vsel %vm704, %v787, %v825
  %v827 = vsel %vm706, %v794, %v826
  %v828 = vsel %vm708, %v801, %v827
  %v829 = vsel %vm710, %v808, %v828
  %v830 = vsel %vm712, %v815, %v829
  %s832 = scalar_lea.vmem %s5, 8
  %833 = vst [vmem:[%s832] sm:$0xff] %v830
  // Predicated region
  $region22: #{residual_block_pallas.1} parent=0 // pred_check
    _
  $region23: #{residual_block_pallas.1} parent=0 // pred_check_branch
    %835 = sbr.rel (0) target = $region25
  $region24: #{residual_block_pallas.1} parent=0 // pred_region
    _
  $region25: #{residual_block_pallas.1} parent=0 // pred_fallthru
    _
  // Predicated region
  $region26: #{residual_block_pallas.1} parent=0 // pred_check
    _
  $region27: #{residual_block_pallas.1} parent=0 // pred_check_branch
    %837 = sbr.rel (0) target = $region29
  $region28: #{residual_block_pallas.1} parent=0 // pred_region
    _
  $region29: #{residual_block_pallas.1} parent=0 // pred_fallthru
    _

</llo_original>
